<compile_context>
chip_gen: v5e
topology: v5e:2x2
jax: 0.10.0
libtpu: 0.0.40
codegen_flags: <defaults>
</compile_context>

<pallas_src>
import functools

import jax
import jax.numpy as jnp
from jax import lax
from jax.experimental import pallas as pl
from jax.experimental.pallas import tpu as pltpu


def _round_up(a, m):
    return ((a + m - 1) // m) * m


def _mdn_kernel(n_hidden, kdim, pad, *refs):
    """refs = [x, (w_h, b_h) * n_hidden, w_heads, b_heads, out]

    w_heads : (hidden_last, pad)  columns [0:kdim]=pi, [kdim:2k]=mu, [2k:3k]=sig2
    b_heads : (1, pad)
    out     : (TM, pad)           columns [softmax(pi) | mu | exp(sig2) | 0...]
    """
    x_ref = refs[0]
    idx = 1

    # Hidden MLP: Linear + Tanh per layer (weights resident in VMEM).
    h = x_ref[...]
    for _ in range(n_hidden):
        w = refs[idx][...]
        b = refs[idx + 1][...]
        idx += 2
        h = jnp.tanh(jnp.dot(h, w, preferred_element_type=jnp.float32) + b)

    w_heads = refs[idx][...]
    b_heads = refs[idx + 1][...]
    out_ref = refs[idx + 2]

    # One fused MXU push for all three heads: (TM, hidden) @ (hidden, pad).
    z = jnp.dot(h, w_heads, preferred_element_type=jnp.float32) + b_heads

    # Column masks for the three head ranges inside the single 128-wide slab.
    col = lax.broadcasted_iota(jnp.int32, z.shape, 1)
    is_pi = col < kdim
    is_mu = (col >= kdim) & (col < 2 * kdim)
    is_sig = (col >= 2 * kdim) & (col < 3 * kdim)

    # pi head: softmax over only the pi columns (masked max / sum).
    neg_inf = jnp.float32(-jnp.inf)
    pi_logits = jnp.where(is_pi, z, neg_inf)
    m = jnp.max(pi_logits, axis=-1, keepdims=True)
    e = jnp.exp(pi_logits - m)          # masked columns -> exp(-inf) = 0
    denom = jnp.sum(e, axis=-1, keepdims=True)
    pi = e * pl.reciprocal(denom, approx=False)

    # sig2 head: exp(Linear).  Mask z to 0 outside the sig2 range before exp so
    # large logits elsewhere can't overflow (result is discarded anyway).
    sig2 = jnp.exp(jnp.where(is_sig, z, 0.0))

    # Assemble the full lane-dense slab and do one unmasked 128-aligned store.
    out = jnp.where(is_pi, pi, jnp.where(is_mu, z, jnp.where(is_sig, sig2, 0.0)))
    out_ref[...] = out


def init_mdn_params(key, n_inputs, n_outputs, n_components, hidden_units):
    """Deterministic parameter init (uniform, PyTorch-style fan_in scaling)."""
    sizes = [n_inputs] + list(hidden_units)
    params = {"hidden": []}

    def linear(key, fan_in, fan_out):
        kw, kb = jax.random.split(key)
        bound = 1.0 / jnp.sqrt(jnp.float32(fan_in))
        w = jax.random.uniform(kw, (fan_in, fan_out), jnp.float32, -bound, bound)
        b = jax.random.uniform(kb, (1, fan_out), jnp.float32, -bound, bound)
        return w, b

    keys = jax.random.split(key, len(sizes) - 1 + 3)
    for i in range(len(sizes) - 1):
        params["hidden"].append(linear(keys[i], sizes[i], sizes[i + 1]))

    k_last = sizes[-1]
    kdim = n_outputs * n_components
    params["pi"] = linear(keys[-3], k_last, kdim)
    params["mu"] = linear(keys[-2], k_last, kdim)
    params["sig2"] = linear(keys[-1], k_last, kdim)
    return params


def mdn_forward(x, params, n_outputs, n_components, block_batch=4096):
    """x: (B, n_inputs) float32 -> (pi, mu, sig2), each (B, n_outputs, n_components)."""
    B, n_in = x.shape
    kdim = n_outputs * n_components
    n_hidden = len(params["hidden"])
    hidden_last = params["hidden"][-1][0].shape[1]

    # Single lane-dense slab holding all three heads (multiple of 128 wide).
    PAD = _round_up(3 * kdim, 128)

    w_heads = jnp.zeros((hidden_last, PAD), jnp.float32)
    b_heads = jnp.zeros((1, PAD), jnp.float32)
    for h_i, (w, b) in enumerate([params["pi"], params["mu"], params["sig2"]]):
        lo = h_i * kdim
        w_heads = w_heads.at[:, lo:lo + kdim].set(w)
        b_heads = b_heads.at[:, lo:lo + kdim].set(b)

    # Batch tiling: TM multiple of 8, capped so moderate batches yield >= 2
    # tiles (v7x megacore), and batch padded to a multiple of TM.
    tm_cap = _round_up(max((B + 1) // 2, 1), 8)
    TM = max(8, min(_round_up(block_batch, 8), tm_cap))
    B_pad = _round_up(B, TM)
    if B_pad != B:
        x = jnp.pad(x, ((0, B_pad - B), (0, 0)))
    grid = (B_pad // TM,)

    flat_inputs = [x]
    for w, b in params["hidden"]:
        flat_inputs += [w, b]
    flat_inputs += [w_heads, b_heads]

    # x is blocked over batch; weights/biases get the same (full) block every
    # grid step so they stay resident in VMEM.  (ndim bound via default arg to
    # avoid late-binding closure bugs.)
    # TODO(synk): weights could use pipeline_mode=pl.Buffered(1) to avoid a
    # redundant second buffer; skipped since the saving is ~100 KB here.
    in_specs = [pl.BlockSpec((TM, n_in), lambda i: (i, 0))]
    for a in flat_inputs[1:]:
        in_specs.append(pl.BlockSpec(a.shape, lambda i, nd=a.ndim: (0,) * nd))
    out_specs = pl.BlockSpec((TM, PAD), lambda i: (i, 0))
    out_shape = jax.ShapeDtypeStruct((B_pad, PAD), jnp.float32)

    kernel = functools.partial(_mdn_kernel, n_hidden, kdim, PAD)

    out = pl.pallas_call(
        kernel,
        grid=grid,
        in_specs=in_specs,
        out_specs=out_specs,
        out_shape=out_shape,
        compiler_params=pltpu.CompilerParams(
            # No cross-iteration state -> parallel batch axis (v7x megacore).
            dimension_semantics=("parallel",),
            # ~5 MiB actually needed at TM=4096; explicit limit keeps the same
            # tiling safe on v5e (16 MiB scoped default) and v7x (64 MiB VMEM).
            vmem_limit_bytes=32 * 1024 * 1024,
        ),
    )(*flat_inputs)

    shape = (B, n_outputs, n_components)
    pi = out[:B, 0:kdim].reshape(shape)
    mu = out[:B, kdim:2 * kdim].reshape(shape)
    sig2 = out[:B, 2 * kdim:3 * kdim].reshape(shape)
    return pi, mu, sig2


def mdn_reference(x, params, n_outputs, n_components):
    """Pure-JAX reference matching the PyTorch forward, for verification."""
    h = x
    for w, b in params["hidden"]:
        h = jnp.tanh(h @ w + b)
    w, b = params["pi"]
    pi = jax.nn.softmax(h @ w + b, axis=-1)
    w, b = params["mu"]
    mu = h @ w + b
    w, b = params["sig2"]
    sig2 = jnp.exp(h @ w + b)
    shape = (x.shape[0], n_outputs, n_components)
    return pi.reshape(shape), mu.reshape(shape), sig2.reshape(shape)


def _check(x, params, n_outputs, n_components, **kw):
    pi, mu, sig2 = mdn_forward(x, params, n_outputs, n_components, **kw)
    jax.block_until_ready((pi, mu, sig2))
    pi_r, mu_r, sig2_r = mdn_reference(x, params, n_outputs, n_components)
    B = x.shape[0]
    assert pi.shape == (B, n_outputs, n_components)
    assert mu.shape == (B, n_outputs, n_components)
    assert sig2.shape == (B, n_outputs, n_components)
    assert jnp.allclose(pi, pi_r, atol=1e-5)
    assert jnp.allclose(mu, mu_r, atol=1e-5)
    assert jnp.allclose(sig2, sig2_r, atol=1e-4)
    assert jnp.allclose(jnp.sum(pi.reshape(B, -1), axis=-1), 1.0, atol=1e-5)


if __name__ == "__main__":
    n_inputs = 4
    n_outputs = 3
    n_components = 5
    hidden_units = [32]

    key = jax.random.PRNGKey(0)
    k_params, k_x1, k_x2 = jax.random.split(key, 3)
    params = init_mdn_params(k_params, n_inputs, n_outputs, n_components, hidden_units)

    # Small single-tile case.
    x_small = jax.random.normal(k_x1, (8, n_inputs), jnp.float32)
    _check(x_small, params, n_outputs, n_components)

    # Multi-tile case (exercises the parallel batch grid + padding path).
    x_multi = jax.random.normal(k_x2, (48, n_inputs), jnp.float32)
    _check(x_multi, params, n_outputs, n_components, block_batch=16)

    print("KERNEL_OK")
</pallas_src>

<mosaic_0001>
module attributes {stable_mosaic.version = 11 : i64} {
  func.func @_mdn_kernel(%arg0: i32, %arg1: memref<8x4xf32, #tpu.memory_space<vmem>>, %arg2: memref<4x32xf32, #tpu.memory_space<vmem>>, %arg3: memref<1x32xf32, #tpu.memory_space<vmem>>, %arg4: memref<32x128xf32, #tpu.memory_space<vmem>>, %arg5: memref<1x128xf32, #tpu.memory_space<vmem>>, %arg6: memref<8x128xf32, #tpu.memory_space<vmem>>) attributes {dimension_semantics = [#tpu.dimension_semantics<parallel>], iteration_bounds = array<i64: 1>, scalar_prefetch = 0 : i64, scratch_operands = 0 : i64, tpu.core_type = #tpu.core_type<tc>, window_params = [{transform_indices = @transform_0, window_bounds = array<i64: 8, 4>}, {pipeline_mode = #tpu.pipeline_mode<synchronous>, transform_indices = @transform_1, window_bounds = array<i64: 4, 32>}, {pipeline_mode = #tpu.pipeline_mode<synchronous>, transform_indices = @transform_2, window_bounds = array<i64: 1, 32>}, {pipeline_mode = #tpu.pipeline_mode<synchronous>, transform_indices = @transform_3, window_bounds = array<i64: 32, 128>}, {pipeline_mode = #tpu.pipeline_mode<synchronous>, transform_indices = @transform_4, window_bounds = array<i64: 1, 128>}, {transform_indices = @transform_5, window_bounds = array<i64: 8, 128>}]} {
    %c0 = arith.constant 0 : index
    %c0_0 = arith.constant 0 : index
    %0 = vector.load %arg1[%c0, %c0_0] : memref<8x4xf32, #tpu.memory_space<vmem>>, vector<8x4xf32>
    %c0_1 = arith.constant 0 : index
    %c0_2 = arith.constant 0 : index
    %1 = vector.load %arg2[%c0_1, %c0_2] : memref<4x32xf32, #tpu.memory_space<vmem>>, vector<4x32xf32>
    %c0_3 = arith.constant 0 : index
    %c0_4 = arith.constant 0 : index
    %2 = vector.load %arg3[%c0_3, %c0_4] : memref<1x32xf32, #tpu.memory_space<vmem>>, vector<1x32xf32>
    %cst = arith.constant dense<0.000000e+00> : vector<8x32xf32>
    %3 = tpu.matmul %0, %1, %cst {dimension_numbers = #tpu.dot_dimension_numbers<[1], [0], [0], [1], [0, 0, 1, 1], [], []>} : vector<8x4xf32>, vector<4x32xf32>, vector<8x32xf32> -> vector<8x32xf32>
    %4 = vector.broadcast %2 : vector<1x32xf32> to vector<8x32xf32>
    %5 = arith.addf %3, %4 : vector<8x32xf32>
    %6 = math.tanh %5 : vector<8x32xf32>
    %c0_5 = arith.constant 0 : index
    %c0_6 = arith.constant 0 : index
    %7 = vector.load %arg4[%c0_5, %c0_6] : memref<32x128xf32, #tpu.memory_space<vmem>>, vector<32x128xf32>
    %c0_7 = arith.constant 0 : index
    %c0_8 = arith.constant 0 : index
    %8 = vector.load %arg5[%c0_7, %c0_8] : memref<1x128xf32, #tpu.memory_space<vmem>>, vector<1x128xf32>
    %cst_9 = arith.constant dense<0.000000e+00> : vector<8x128xf32>
    %9 = tpu.matmul %6, %7, %cst_9 {dimension_numbers = #tpu.dot_dimension_numbers<[1], [0], [0], [1], [0, 0, 1, 1], [], []>} : vector<8x32xf32>, vector<32x128xf32>, vector<8x128xf32> -> vector<8x128xf32>
    %10 = vector.broadcast %8 : vector<1x128xf32> to vector<8x128xf32>
    %11 = arith.addf %9, %10 : vector<8x128xf32>
    %12 = tpu.iota {dimensions = array<i32: 1>} : vector<8x128xi32>
    %c15_i32 = arith.constant 15 : i32
    %13 = vector.broadcast %c15_i32 : i32 to vector<8x128xi32>
    %14 = arith.cmpi slt, %12, %13 : vector<8x128xi32>
    %c15_i32_10 = arith.constant 15 : i32
    %15 = vector.broadcast %c15_i32_10 : i32 to vector<8x128xi32>
    %16 = arith.cmpi sge, %12, %15 : vector<8x128xi32>
    %c30_i32 = arith.constant 30 : i32
    %17 = vector.broadcast %c30_i32 : i32 to vector<8x128xi32>
    %18 = arith.cmpi slt, %12, %17 : vector<8x128xi32>
    %19 = arith.andi %16, %18 : vector<8x128xi1>
    %c30_i32_11 = arith.constant 30 : i32
    %20 = vector.broadcast %c30_i32_11 : i32 to vector<8x128xi32>
    %21 = arith.cmpi sge, %12, %20 : vector<8x128xi32>
    %c45_i32 = arith.constant 45 : i32
    %22 = vector.broadcast %c45_i32 : i32 to vector<8x128xi32>
    %23 = arith.cmpi slt, %12, %22 : vector<8x128xi32>
    %24 = arith.andi %21, %23 : vector<8x128xi1>
    %cst_12 = arith.constant 0xFF800000 : f32
    %25 = vector.broadcast %cst_12 : f32 to vector<8x128xf32>
    %26 = arith.select %14, %11, %25 : vector<8x128xi1>, vector<8x128xf32>
    %cst_13 = arith.constant dense<0xFF800000> : vector<8xf32>
    %27 = vector.multi_reduction <maximumf>, %26, %cst_13 [1] : vector<8x128xf32> to vector<8xf32>
    %28 = vector.shape_cast %27 : vector<8xf32> to vector<8x1xf32>
    %29 = vector.broadcast %28 : vector<8x1xf32> to vector<8x128xf32>
    %30 = arith.subf %26, %29 : vector<8x128xf32>
    %31 = math.exp %30 : vector<8x128xf32>
    %cst_14 = arith.constant dense<0.000000e+00> : vector<8xf32>
    %32 = vector.multi_reduction <add>, %31, %cst_14 [1] : vector<8x128xf32> to vector<8xf32>
    %33 = vector.shape_cast %32 : vector<8xf32> to vector<8x1xf32>
    %34 = tpu.reciprocal %33 : vector<8x1xf32> -> vector<8x1xf32>
    %35 = vector.broadcast %34 : vector<8x1xf32> to vector<8x128xf32>
    %36 = arith.mulf %31, %35 : vector<8x128xf32>
    %cst_15 = arith.constant 0.000000e+00 : f32
    %37 = vector.broadcast %cst_15 : f32 to vector<8x128xf32>
    %38 = arith.select %24, %11, %37 : vector<8x128xi1>, vector<8x128xf32>
    %39 = math.exp %38 : vector<8x128xf32>
    %cst_16 = arith.constant 0.000000e+00 : f32
    %40 = vector.broadcast %cst_16 : f32 to vector<8x128xf32>
    %41 = arith.select %24, %39, %40 : vector<8x128xi1>, vector<8x128xf32>
    %42 = arith.select %19, %11, %41 : vector<8x128xi1>, vector<8x128xf32>
    %43 = arith.select %14, %36, %42 : vector<8x128xi1>, vector<8x128xf32>
    %c0_17 = arith.constant 0 : index
    %c0_18 = arith.constant 0 : index
    %44 = vector.load %arg6[%c0_17, %c0_18] : memref<8x128xf32, #tpu.memory_space<vmem>>, vector<8x128xf32>
    tpu.vector_store %arg6[%c0_17, %c0_18], %43 {strides = array<i32>} : memref<8x128xf32, #tpu.memory_space<vmem>>, vector<8x128xf32>,
    return
  }
  func.func @transform_0(%arg0: i32) -> (i32, i32) {
    %c0_i32 = arith.constant 0 : i32
    %c0_i32_0 = arith.constant 0 : i32
    return %arg0, %c0_i32 : i32, i32
  }
  func.func @transform_1(%arg0: i32) -> (i32, i32) {
    %c0_i32 = arith.constant 0 : i32
    %c0_i32_0 = arith.constant 0 : i32
    %c0_i32_1 = arith.constant 0 : i32
    return %c0_i32, %c0_i32_0 : i32, i32
  }
  func.func @transform_2(%arg0: i32) -> (i32, i32) {
    %c0_i32 = arith.constant 0 : i32
    %c0_i32_0 = arith.constant 0 : i32
    %c0_i32_1 = arith.constant 0 : i32
    return %c0_i32, %c0_i32_0 : i32, i32
  }
  func.func @transform_3(%arg0: i32) -> (i32, i32) {
    %c0_i32 = arith.constant 0 : i32
    %c0_i32_0 = arith.constant 0 : i32
    %c0_i32_1 = arith.constant 0 : i32
    return %c0_i32, %c0_i32_0 : i32, i32
  }
  func.func @transform_4(%arg0: i32) -> (i32, i32) {
    %c0_i32 = arith.constant 0 : i32
    %c0_i32_0 = arith.constant 0 : i32
    %c0_i32_1 = arith.constant 0 : i32
    return %c0_i32, %c0_i32_0 : i32, i32
  }
  func.func @transform_5(%arg0: i32) -> (i32, i32) {
    %c0_i32 = arith.constant 0 : i32
    %c0_i32_0 = arith.constant 0 : i32
    return %arg0, %c0_i32 : i32, i32
  }
}

</mosaic_0001>

<llo_original>
// kernel: tpu_custom_call.1
$region0: #{tpu_custom_call.1}
  #allocation0 [shape = 'u32[]', space=smem, size = 0x4, offset = 0x4, fixed_abs, tag = 'smem constant byte address 0x4 - core index']
  #allocation1 [shape = 'u32[72,128]{1,0:T(1,128)}', space=vmem, size = 0x9000, scoped, tag = 'internal scratch']
  %s0 = inlined_call_operand.vmem [shape: f32[8,4], index: 0, kind: input, shape index: {}]
  %s1 = inlined_call_operand.vmem [shape: f32[4,32], index: 1, kind: input, shape index: {}]
  %s2 = inlined_call_operand.vmem [shape: f32[1,32], index: 2, kind: input, shape index: {}]
  %s3 = inlined_call_operand.hbm [shape: f32[32,128], index: 3, kind: input, shape index: {}]
  %s4 = inlined_call_operand.vmem [shape: f32[1,128], index: 4, kind: input, shape index: {}]
  %s5 = inlined_call_operand.hbm [shape: f32[8,128], index: 5, kind: output, shape index: {}]
  %s6 = sld [smem:[#allocation0]]
  $region34: #{tpu_custom_call.1} parent=0
    _
  %s8 = ssub.s32 1, %s6
  %s9 = scalar_select 0, %s8, %s6
  $region1: #{tpu_custom_call.1} parent=0
    #allocation2 [shape = 'u8[16384]{0}', space=vmem, size = 0x4000, scoped, tag = 'input window, operand 3, single buffered']
    #allocation3 [shape = 's32[1]{0}', space=sflag, size = 0x4, scoped, tag = 'scoped memory for tpu_custom_call.1']
    #allocation4 [shape = 's32[1]{0}', space=sflag, size = 0x4, scoped, tag = 'scoped memory for tpu_custom_call.1']
    #allocation5 [shape = 'u8[4096]{0}', space=vmem, size = 0x1000, scoped, tag = 'output window, operand 0, single buffered']
    %10 = vsyncpa [#allocation3], 0
    %11 = vsyncpa [#allocation4], 0
    // Predicated region
    $region2: #{tpu_custom_call.1} parent=1 // pred_check
      _
    $region3: #{tpu_custom_call.1} parent=1 // pred_check_branch
      %13 = sbr.rel (0) target = $region5
    $region4: #{tpu_custom_call.1} parent=1 // pred_region
      _
    $region5: #{tpu_custom_call.1} parent=1 // pred_fallthru
      _
    // Predicated region
    $region6: #{tpu_custom_call.1} parent=1 // pred_check
      _
    $region7: #{tpu_custom_call.1} parent=1 // pred_check_branch
      %15 = sbr.rel (0) target = $region9
    $region8: #{tpu_custom_call.1} parent=1 // pred_region
      _
    $region9: #{tpu_custom_call.1} parent=1 // pred_fallthru
      _
    // Predicated region
    $region10: #{tpu_custom_call.1} parent=1 // pred_check
      _
    $region11: #{tpu_custom_call.1} parent=1 // pred_check_branch
      %17 = sbr.rel (0) target = $region13
    $region12: #{tpu_custom_call.1} parent=1 // pred_region
      _
    $region13: #{tpu_custom_call.1} parent=1 // pred_fallthru
      _
    // Predicated region
    $region14: #{tpu_custom_call.1} parent=1 // pred_check
      _
    $region15: #{tpu_custom_call.1} parent=1 // pred_check_branch
      %19 = sbr.rel (0) target = $region17
    $region16: #{tpu_custom_call.1} parent=1 // pred_region
      %21 = vsyncadd [#allocation3], 0
      %s22 = sshll.u32 %s3, 4
      %s23 = int_to_ptr.hbm [resolvable:$true] %s22
      %s24 = sshll.u32 [#allocation2], 4
      %s25 = int_to_ptr.vmem [resolvable:$true] %s24
      %30 = dma.hbm_to_vmem [thread:$0]  %s23, 512, %s25, [#allocation3], 128, 128, 8
    $region17: #{tpu_custom_call.1} parent=1 // pred_fallthru
      _
    // Predicated region
    $region18: #{tpu_custom_call.1} parent=1 // pred_check
      _
    $region19: #{tpu_custom_call.1} parent=1 // pred_check_branch
      %32 = sbr.rel (0) target = $region21
    $region20: #{tpu_custom_call.1} parent=1 // pred_region
      _
    $region21: #{tpu_custom_call.1} parent=1 // pred_fallthru
      _
    // Predicated region
    $region22: #{tpu_custom_call.1} parent=1 // pred_check
      _
    $region23: #{tpu_custom_call.1} parent=1 // pred_check_branch
      %34 = sbr.rel (0) target = $region25
    $region24: #{tpu_custom_call.1} parent=1 // pred_region
      %36 = dma.done [#allocation3], 512
    $region25: #{tpu_custom_call.1} parent=1 // pred_fallthru
      _
    %v37 = vld [vmem:[%s0] sm:$0xff]
    %v38 = vld [vmem:[%s1] sm:$0xf]
    %v39 = vld [vmem:[%s2] sm:$0x1]
    %v41 = vperm.slane %v39, 0
    %vm43 = vcmask 31744
    %v45 = vsel %vm43, %v37, 0
    %vm47 = vcmask 1043456
    %v49 = vsel %vm47, %v38, 0
    %51 = vmatpush.msra.mxu0 0.0
    %52 = vmatpush.msra.mxu0 0.0
    %53 = vmatpush.msra.mxu0 0.0
    %54 = vmatpush.msra.mxu0 0.0
    %55 = vmatpush.msra.mxu0 0.0
    %56 = vmatpush.msra.mxu0 0.0
    %57 = vmatpush.msra.mxu0 0.0
    %58 = vmatpush.msra.mxu0 0.0
    %59 = vmatpush.msra.mxu0 0.0
    %60 = vmatpush.msra.mxu0 0.0
    %61 = vmatpush.msra.mxu0 0.0
    %62 = vmatpush.msra.mxu0 0.0
    %63 = vmatpush.msra.mxu0 0.0
    %64 = vmatpush.msra.mxu0 0.0
    %65 = vmatpush.msra.mxu0 0.0
    %66 = vmatpush.msra.mxu0 %v49
    %67 = vmatmul.f32.gmra.mxu0 %v45
    %v68 = vpop.f32.mrf.mxu0
    %v69 = vadd.f32 %v41, %v68
    %70 = vdwg.mxu0
    %v71 = vtanh.pop %v69
    %v72 = vld [vmem:[#allocation2] sm:$0xff]
    %v73 = vld [vmem:[#allocation2 + $0x8] sm:$0xff]
    %v74 = vld [vmem:[#allocation2 + $0x10] sm:$0xff]
    %v75 = vld [vmem:[#allocation2 + $0x18] sm:$0xff]
    %v76 = vld [vmem:[%s4] sm:$0x1]
    %v78 = vperm.slane %v76, 0
    %vm80 = vcmask 261120
    %v82 = vsel %vm80, %v71, 0
    %84 = vmatpush.msra.mxu0 0.0
    %85 = vmatpush.msra.mxu0 0.0
    %86 = vmatpush.msra.mxu0 0.0
    %87 = vmatpush.msra.mxu0 0.0
    %88 = vmatpush.msra.mxu0 0.0
    %89 = vmatpush.msra.mxu0 0.0
    %90 = vmatpush.msra.mxu0 0.0
    %91 = vmatpush.msra.mxu0 0.0
    %92 = vmatpush.msra.mxu0 0.0
    %93 = vmatpush.msra.mxu0 0.0
    %94 = vmatpush.msra.mxu0 0.0
    %95 = vmatpush.msra.mxu0 0.0
    %96 = vmatpush.msra.mxu0 %v75
    %97 = vmatpush.msra.mxu0 %v74
    %98 = vmatpush.msra.mxu0 %v73
    %99 = vmatpush.msra.mxu0 %v72
    %100 = vmatmul.f32.gmra.mxu0 %v82
    %v101 = vpop.f32.mrf.mxu0
    %v102 = vadd.f32 %v78, %v101
    %103 = vdwg.mxu0
    %v104 = vlaneseq
    %v105 = vand.u32 %v104, 127
    %vm106 = vcmp.lt.s32.totalorder %v105, 15
    %vm107 = vcmp.ge.s32.totalorder %v105, 15
    %vm108 = vcmp.lt.s32.totalorder %v105, 30
    %vm109 = vmand %vm107, %vm108
    %vm110 = vcmp.ge.s32.totalorder %v105, 30
    %vm111 = vcmp.lt.s32.totalorder %v105, 45
    %vm112 = vmand %vm110, %vm111
    %v113 = vsel %vm106, %v102, -inf
    %114 = vmax.xlane.f32.xlu0 %v113
    %v115 = vpop.xlane.xlu0 %114
    %v116 = vsub.f32 %v113, %v115
    %v117 = vmul.f32 %v116, 1.442695
    %v118 = vpow.pop %v117
    %119 = vadd.xlane.f32.xlu0 %v118
    %v120 = vpop.xlane.xlu0 %119
    %v121 = vrcp.pop %v120
    %v122 = vmul.f32 %v120, %v121
    %v123 = vsub.f32 1.0, %v122
    %v124 = vmul.f32 %v121, %v123
    %v125 = vadd.f32 %v121, %v124
    %vm126 = vweird.f32 %v120
    %vm127 = vweird.f32 %v121
    %vm128 = vmor %vm126, %vm127
    %v129 = vsel %vm128, %v121, %v125
    %v130 = vand.u32 2147483647, %v120
    %vm131 = vcmp.eq.f32.partialorder %v130, 8.507059e+37
    %v132 = vand.u32 %v120, 2147483648
    %v133 = vor.u32 1.1754944e-38, %v132
    %v134 = vsel %vm131, %v133, %v129
    %v135 = vmul.f32 %v118, %v134
    %v136 = vsel %vm112, %v102, 0.0
    %v137 = vmul.f32 %v136, 1.442695
    %v138 = vpow.pop %v137
    %v139 = vsel %vm112, %v138, 0.0
    %v140 = vsel %vm109, %v102, %v139
    %v141 = vsel %vm106, %v135, %v140
    %142 = vst [vmem:[#allocation5] sm:$0xff] %v141
    // Predicated region
    $region26: #{tpu_custom_call.1} parent=1 // pred_check
      _
    $region27: #{tpu_custom_call.1} parent=1 // pred_check_branch
      %144 = sbr.rel (0) target = $region29
    $region28: #{tpu_custom_call.1} parent=1 // pred_region
      %146 = vsyncadd [#allocation4], 0
      %s148 = sshll.u32 [#allocation5], 4
      %s149 = int_to_ptr.vmem [resolvable:$true] %s148
      %s150 = sshll.u32 %s5, 4
      %s151 = int_to_ptr.hbm [resolvable:$true] %s150
      %153 = dma.vmem_to_hbm [thread:$0]  %s149, 128, %s151, [#allocation4]
    $region29: #{tpu_custom_call.1} parent=1 // pred_fallthru
      _
    // Predicated region
    $region30: #{tpu_custom_call.1} parent=1 // pred_check
      _
    $region31: #{tpu_custom_call.1} parent=1 // pred_check_branch
      %155 = sbr.rel (0) target = $region33
    $region32: #{tpu_custom_call.1} parent=1 // pred_region
      %157 = dma.done [#allocation4], 128
    $region33: #{tpu_custom_call.1} parent=1 // pred_fallthru
      _
    %158 = vsyncpa [#allocation3], 1
    %159 = vsyncpa [#allocation4], 1

</llo_original>
